<compile_context>
chip_gen: v6e
topology: v6e:2x2x1
jax: 0.10.0
libtpu: 0.0.40
codegen_flags: <defaults>
</compile_context>

<pallas_src>
import functools

import jax
import jax.numpy as jnp
from jax.experimental import pallas as pl
from jax.experimental.pallas import tpu as pltpu


# ----------------------------- Pallas kernel ---------------------------------

def _sa_mlp_kernel(n_layers, feat_ref, *refs):
    """Shared MLP (scale-folded Conv1x1+BN -> ReLU) + neighbor max-pool for one (b, S-tile).

    feat_ref : [1, K, TS, C0pad] bf16   (K-major grouped features, lane-dense)
    refs     : n_layers * (Wt [Cin_pad, Cout_pad] bf16, shift [1, Cout_pad] f32), out_ref
    out_ref  : [1, TS, Cpad] f32
    """
    out_ref = refs[-1]
    _, K, TS, C0 = feat_ref.shape

    # Collapse once; TS is a multiple of 16 (or the full axis) so this is a layout no-op.
    h = feat_ref[0].reshape(K * TS, C0)                         # bf16 [K*TS, C0pad]

    # Hidden layers on the full K*TS row block (big MXU M dim).
    for l in range(n_layers - 1):
        wt = refs[2 * l][...]                                   # [Cin_pad, Cout_pad] bf16 (BN scale folded)
        sh = refs[2 * l + 1][...]                               # [1, Cout_pad] f32
        y = jnp.dot(h, wt, preferred_element_type=jnp.float32)  # MXU, f32 accumulation
        h = jnp.maximum(y + sh, 0.0).astype(jnp.bfloat16)       # shift + ReLU only (VPU)

    # Last layer streamed per neighbor slab with a running max: peak f32 = [TS, Cpad].
    wt = refs[2 * (n_layers - 1)][...]
    sh = refs[2 * (n_layers - 1) + 1][...]
    m = None
    for j in range(K):
        hj = h[j * TS:(j + 1) * TS, :]                          # static slice
        yj = jnp.maximum(
            jnp.dot(hj, wt, preferred_element_type=jnp.float32) + sh, 0.0)
        m = yj if m is None else jnp.maximum(m, yj)             # VPU max interleaves with MXU pops
    out_ref[0] = m


# ----------------------------- tiling / budgets -------------------------------

def _round_up(x, m=128):
    return ((x + m - 1) // m) * m


def _vmem_budget():
    """(vmem_limit_cap, per_tile_budget) chosen per TPU generation."""
    cap = None
    try:
        info = pltpu.get_tpu_info()
        cap = getattr(info, "vmem_capacity_bytes", None)
    except Exception:
        cap = None
    if cap is None:
        cap = 128 << 20
    if cap <= (64 << 20):            # v7x-class: 64 MiB per TensorCore
        return 46 << 20, 6 << 20
    return 96 << 20, 12 << 20        # v5e / v6e: 128 MiB physical


def _choose_tile_s(S, B, K, C0, c_max, budget_bytes, min_steps=4):
    """Largest 16-aligned divisor of S fitting the per-tile budget, keeping >= min_steps grid steps."""
    cands = [d for d in range(16, S + 1, 16) if S % d == 0]
    if not cands:
        return S                                    # tiny / odd S: use the full axis

    def tile_bytes(ts):
        return (K * ts * C0 * 2                     # bf16 feature tile
                + K * ts * c_max * (4 + 2)          # one f32 matmul result + bf16 activation live
                + 2 * ts * c_max * 4)               # running max + per-slab last-layer result

    fitting = [ts for ts in cands if tile_bytes(ts) <= budget_bytes]
    best = max(fitting) if fitting else min(cands)
    # v7x has 2 TCs sharding "parallel" axes; keep enough steps for pipelined overlap.
    while B * (S // best) < min_steps:
        smaller = [ts for ts in cands if ts < best]
        if not smaller:
            break
        best = max(smaller)
    return best


def sa_mlp_maxpool(feat_kmajor, folded_params, c_last):
    """feat_kmajor: [B, K, S, C0pad] bf16 -> [B, S, c_last] f32."""
    B, K, S, C0 = feat_kmajor.shape
    n_layers = len(folded_params)
    c_pad = folded_params[-1][0].shape[1]           # last-layer Cout_pad (128-multiple)
    c_max = max([C0] + [wt.shape[1] for wt, _ in folded_params])

    limit_cap, tile_budget = _vmem_budget()
    TS = _choose_tile_s(S, B, K, C0, c_max, tile_budget)
    grid = (B, S // TS)

    in_specs = [pl.BlockSpec((1, K, TS, C0), lambda b, s: (b, 0, s, 0))]
    flat = []
    for wt, sh in folded_params:
        in_specs.append(pl.BlockSpec(wt.shape, lambda b, s: (0, 0)))   # resident weights
        in_specs.append(pl.BlockSpec(sh.shape, lambda b, s: (0, 0)))
        flat += [wt, sh]

    # Explicit VMEM budget: double-buffered tiles/weights + live activations + headroom.
    in_tile = K * TS * C0 * 2
    out_tile = TS * c_pad * 4
    w_bytes = sum(wt.size * 2 + sh.size * 4 for wt, sh in folded_params)
    act_bytes = K * TS * c_max * (4 + 2) + 2 * TS * c_pad * 4
    budget = 2 * (in_tile + out_tile + w_bytes) + 2 * act_bytes + (4 << 20)
    vmem_limit = int(min(max(budget, 32 << 20), limit_cap))

    out = pl.pallas_call(
        functools.partial(_sa_mlp_kernel, n_layers),
        out_shape=jax.ShapeDtypeStruct((B, S, c_pad), jnp.float32),
        grid=grid,
        in_specs=in_specs,
        out_specs=pl.BlockSpec((1, TS, c_pad), lambda b, s: (b, s, 0)),
        compiler_params=pltpu.CompilerParams(
            dimension_semantics=("parallel", "parallel"),
            vmem_limit_bytes=vmem_limit),
    )(feat_kmajor, *flat)
    return out[..., :c_last]


# ----------------------------- JAX glue (sampling / grouping) ----------------

def index_points(points, idx):
    """points: [B, N, C]; idx: [B, ...] int -> [B, ..., C]"""
    return jax.vmap(lambda p, i: p[i])(points, idx)


def farthest_point_sample(xyz, npoint):
    """xyz: [B, N, 3] -> [B, npoint] int32 (deterministic start at index 0)."""
    B, N, _ = xyz.shape

    def body(i, state):
        centroids, distance, farthest = state
        centroids = centroids.at[:, i].set(farthest)
        centroid = jax.vmap(lambda p, f: p[f])(xyz, farthest)[:, None, :]   # [B,1,3]
        dist = jnp.sum((xyz - centroid) ** 2, axis=-1)                      # [B,N]
        distance = jnp.minimum(distance, dist)
        farthest = jnp.argmax(distance, axis=-1).astype(jnp.int32)
        return centroids, distance, farthest

    centroids = jnp.zeros((B, npoint), dtype=jnp.int32)
    distance = jnp.full((B, N), 1e10, dtype=xyz.dtype)
    farthest = jnp.zeros((B,), dtype=jnp.int32)
    centroids, _, _ = jax.lax.fori_loop(0, npoint, body, (centroids, distance, farthest))
    return centroids


def knn_index(new_xyz, xyz, nsample):
    """nsample smallest squared distances per centroid (top_k, cheaper than full argsort)."""
    d = jnp.sum((new_xyz[:, :, None, :] - xyz[:, None, :, :]) ** 2, axis=-1)  # [B,S,N]
    _, idx = jax.lax.top_k(-d, nsample)                                       # [B,S,K]
    return idx


# ----------------------------- TransitionDown --------------------------------

def init_transition_down_params(key, channels):
    """Conv2d(1x1) + BatchNorm2d params for each MLP layer (channels[1:])."""
    params = []
    last = channels[0]
    for c in channels[1:]:
        key, k1, k2, k3, k4, k5 = jax.random.split(key, 6)
        w = jax.random.normal(k1, (c, last), jnp.float32) * 0.1   # conv weight [Cout, Cin] (1x1)
        b = jax.random.normal(k2, (c,), jnp.float32) * 0.1        # conv bias
        gamma = jax.random.uniform(k3, (c,), jnp.float32, minval=0.5, maxval=1.5)
        beta = jax.random.normal(k4, (c,), jnp.float32) * 0.1
        rmean = jax.random.normal(k5, (c,), jnp.float32) * 0.1
        rvar = jnp.ones((c,), jnp.float32)
        params.append(dict(w=w, b=b, gamma=gamma, beta=beta, rmean=rmean, rvar=rvar))
        last = c
    return params


def _fold_params(params, c0, eps=1e-5):
    """Fold Conv2d(1x1)+BN(eval) -> (Wt [Cin_pad, Cout_pad] bf16 with BN scale folded in,
    shift [1, Cout_pad] f32). Every channel dim is zero-padded to a 128-multiple so all
    kernel loads/stores are lane-dense; padded channels compute relu(0)=0."""
    folded = []
    cin, cin_pad = c0, _round_up(c0)
    for p in params:
        cout = p["w"].shape[0]
        cout_pad = _round_up(cout)
        inv = 1.0 / jnp.sqrt(p["rvar"] + eps)
        scale = p["gamma"] * inv                                    # [Cout]
        shift = (p["b"] - p["rmean"]) * scale + p["beta"]           # [Cout]
        wt = p["w"].T * scale[None, :]                              # [Cin, Cout], scale folded
        wt = jnp.pad(wt, ((0, cin_pad - cin), (0, cout_pad - cout)))
        shift = jnp.pad(shift, (0, cout_pad - cout))
        folded.append((wt.astype(jnp.bfloat16),
                       shift.reshape(1, -1).astype(jnp.float32)))
        cin, cin_pad = cout, cout_pad
    return folded


def transition_down_forward(params, xyz, normal, points, k, nneighbor, fps_index=None):
    """
    xyz:    [B, N, 3] float32
    normal: [B, N, 3] float32
    points: [B, N, D] float32  (D = channels[0] - 3)
    returns (new_xyz [B,k,3], new_normal [B,k,3], new_points [B,k,channels[-1]])
    """
    if fps_index is None:
        fps_index = farthest_point_sample(xyz, k)                 # [B, k]
    new_xyz = index_points(xyz, fps_index)                        # [B, k, 3]
    new_normal = index_points(normal, fps_index)                  # [B, k, 3]

    idx = knn_index(new_xyz, xyz, nneighbor)                      # [B, k, K]
    grouped_xyz = index_points(xyz, idx)                          # [B, k, K, 3]
    grouped_xyz_norm = grouped_xyz - new_xyz[:, :, None, :]
    grouped_points = index_points(points, idx)                    # [B, k, K, D]
    new_feat = jnp.concatenate([grouped_xyz_norm, grouped_points], axis=-1)  # [B,k,K,C0]

    # K-major, bf16, lane-dense (C0 padded to 128) features for the Pallas hot path.
    c0 = new_feat.shape[-1]
    c0_pad = _round_up(c0)
    feat_kmajor = jnp.transpose(new_feat, (0, 2, 1, 3)).astype(jnp.bfloat16)  # [B,K,k,C0]
    if c0_pad != c0:
        feat_kmajor = jnp.pad(feat_kmajor, ((0, 0), (0, 0), (0, 0), (0, c0_pad - c0)))

    folded = _fold_params(params, c0)
    c_last = params[-1]["w"].shape[0]
    new_points = sa_mlp_maxpool(feat_kmajor, folded, c_last)      # [B, k, c_last]
    return new_xyz, new_normal, new_points


# pure-JAX reference for the kernel portion (matches the kernel's padding + bf16 casting)
def _mlp_maxpool_ref(new_feat, folded, c_last):
    c0 = new_feat.shape[-1]
    c0_pad = folded[0][0].shape[0]
    h = jnp.pad(new_feat, ((0, 0), (0, 0), (0, 0), (0, c0_pad - c0))).astype(jnp.bfloat16)
    n = len(folded)
    for l, (wt, sh) in enumerate(folded):
        y = jnp.einsum("bskc,cd->bskd", h, wt,
                       preferred_element_type=jnp.float32) + sh
        a = jnp.maximum(y, 0.0)
        h = a.astype(jnp.bfloat16) if l < n - 1 else a
    return jnp.max(h, axis=2)[..., :c_last]


# ----------------------------- main -------------------------------------------

if __name__ == "__main__":
    B, N = 2, 16
    k, nneighbor = 8, 4
    channels = [32, 64, 64]          # channels[0] = 3 + d_points
    d_points = channels[0] - 3

    key = jax.random.PRNGKey(0)
    kx, kn, kp, kw = jax.random.split(key, 4)
    xyz = jax.random.normal(kx, (B, N, 3), jnp.float32)
    normal = jax.random.normal(kn, (B, N, 3), jnp.float32)
    points = jax.random.normal(kp, (B, N, d_points), jnp.float32)

    params = init_transition_down_params(kw, channels)

    new_xyz, new_normal, new_points = jax.jit(
        functools.partial(transition_down_forward, k=k, nneighbor=nneighbor)
    )(params, xyz, normal, points)
    jax.block_until_ready((new_xyz, new_normal, new_points))

    assert new_xyz.shape == (B, k, 3)
    assert new_normal.shape == (B, k, 3)
    assert new_points.shape == (B, k, channels[-1])

    # verify the Pallas MLP+maxpool against a pure-JAX reference
    fps_idx = farthest_point_sample(xyz, k)
    c_xyz = index_points(xyz, fps_idx)
    idx = knn_index(c_xyz, xyz, nneighbor)
    feat = jnp.concatenate(
        [index_points(xyz, idx) - c_xyz[:, :, None, :], index_points(points, idx)], axis=-1)
    ref = _mlp_maxpool_ref(feat, _fold_params(params, feat.shape[-1]), channels[-1])
    assert jnp.allclose(new_points, ref, rtol=1e-3, atol=1e-3), "kernel mismatch vs reference"

    print("KERNEL_OK")
</pallas_src>

<mosaic_0001>
module attributes {stable_mosaic.version = 11 : i64} {
  func.func @_sa_mlp_kernel(%arg0: i32, %arg1: i32, %arg2: memref<1x4x8x128xbf16, #tpu.memory_space<vmem>>, %arg3: memref<128x128xbf16, #tpu.memory_space<vmem>>, %arg4: memref<1x128xf32, #tpu.memory_space<vmem>>, %arg5: memref<128x128xbf16, #tpu.memory_space<vmem>>, %arg6: memref<1x128xf32, #tpu.memory_space<vmem>>, %arg7: memref<1x8x128xf32, #tpu.memory_space<vmem>>) attributes {dimension_semantics = [#tpu.dimension_semantics<parallel>, #tpu.dimension_semantics<parallel>], iteration_bounds = array<i64: 2, 1>, scalar_prefetch = 0 : i64, scratch_operands = 0 : i64, tpu.core_type = #tpu.core_type<tc>, window_params = [{transform_indices = @transform_0, window_bounds = array<i64: 1, 4, 8, 128>}, {pipeline_mode = #tpu.pipeline_mode<synchronous>, transform_indices = @transform_1, window_bounds = array<i64: 128, 128>}, {pipeline_mode = #tpu.pipeline_mode<synchronous>, transform_indices = @transform_2, window_bounds = array<i64: 1, 128>}, {pipeline_mode = #tpu.pipeline_mode<synchronous>, transform_indices = @transform_3, window_bounds = array<i64: 128, 128>}, {pipeline_mode = #tpu.pipeline_mode<synchronous>, transform_indices = @transform_4, window_bounds = array<i64: 1, 128>}, {transform_indices = @transform_5, window_bounds = array<i64: 1, 8, 128>}]} {
    %c0 = arith.constant 0 : index
    %c0_0 = arith.constant 0 : index
    %c0_1 = arith.constant 0 : index
    %c0_2 = arith.constant 0 : index
    %0 = vector.load %arg2[%c0, %c0_0, %c0_1, %c0_2] : memref<1x4x8x128xbf16, #tpu.memory_space<vmem>>, vector<1x4x8x128xbf16>
    %1 = vector.shape_cast %0 : vector<1x4x8x128xbf16> to vector<4x8x128xbf16>
    %2 = vector.shape_cast %1 : vector<4x8x128xbf16> to vector<32x128xbf16>
    %c0_3 = arith.constant 0 : index
    %c0_4 = arith.constant 0 : index
    %3 = vector.load %arg3[%c0_3, %c0_4] : memref<128x128xbf16, #tpu.memory_space<vmem>>, vector<128x128xbf16>
    %c0_5 = arith.constant 0 : index
    %c0_6 = arith.constant 0 : index
    %4 = vector.load %arg4[%c0_5, %c0_6] : memref<1x128xf32, #tpu.memory_space<vmem>>, vector<1x128xf32>
    %cst = arith.constant dense<0.000000e+00> : vector<32x128xf32>
    %5 = tpu.matmul %2, %3, %cst {dimension_numbers = #tpu.dot_dimension_numbers<[1], [0], [0], [1], [0, 0, 1, 1], [], []>} : vector<32x128xbf16>, vector<128x128xbf16>, vector<32x128xf32> -> vector<32x128xf32>
    %6 = vector.broadcast %4 : vector<1x128xf32> to vector<32x128xf32>
    %7 = arith.addf %5, %6 : vector<32x128xf32>
    %cst_7 = arith.constant 0.000000e+00 : f32
    %8 = vector.broadcast %cst_7 : f32 to vector<32x128xf32>
    %9 = arith.maximumf %7, %8 : vector<32x128xf32>
    %10 = arith.truncf %9 : vector<32x128xf32> to vector<32x128xbf16>
    %c0_8 = arith.constant 0 : index
    %c0_9 = arith.constant 0 : index
    %11 = vector.load %arg5[%c0_8, %c0_9] : memref<128x128xbf16, #tpu.memory_space<vmem>>, vector<128x128xbf16>
    %c0_10 = arith.constant 0 : index
    %c0_11 = arith.constant 0 : index
    %12 = vector.load %arg6[%c0_10, %c0_11] : memref<1x128xf32, #tpu.memory_space<vmem>>, vector<1x128xf32>
    %13 = vector.extract_strided_slice %10 {offsets = [0, 0], sizes = [8, 128], strides = [1, 1]} : vector<32x128xbf16> to vector<8x128xbf16>
    %cst_12 = arith.constant dense<0.000000e+00> : vector<8x128xf32>
    %14 = tpu.matmul %13, %11, %cst_12 {dimension_numbers = #tpu.dot_dimension_numbers<[1], [0], [0], [1], [0, 0, 1, 1], [], []>} : vector<8x128xbf16>, vector<128x128xbf16>, vector<8x128xf32> -> vector<8x128xf32>
    %15 = vector.broadcast %12 : vector<1x128xf32> to vector<8x128xf32>
    %16 = arith.addf %14, %15 : vector<8x128xf32>
    %cst_13 = arith.constant 0.000000e+00 : f32
    %17 = vector.broadcast %cst_13 : f32 to vector<8x128xf32>
    %18 = arith.maximumf %16, %17 : vector<8x128xf32>
    %19 = vector.extract_strided_slice %10 {offsets = [8, 0], sizes = [8, 128], strides = [1, 1]} : vector<32x128xbf16> to vector<8x128xbf16>
    %cst_14 = arith.constant dense<0.000000e+00> : vector<8x128xf32>
    %20 = tpu.matmul %19, %11, %cst_14 {dimension_numbers = #tpu.dot_dimension_numbers<[1], [0], [0], [1], [0, 0, 1, 1], [], []>} : vector<8x128xbf16>, vector<128x128xbf16>, vector<8x128xf32> -> vector<8x128xf32>
    %21 = vector.broadcast %12 : vector<1x128xf32> to vector<8x128xf32>
    %22 = arith.addf %20, %21 : vector<8x128xf32>
    %cst_15 = arith.constant 0.000000e+00 : f32
    %23 = vector.broadcast %cst_15 : f32 to vector<8x128xf32>
    %24 = arith.maximumf %22, %23 : vector<8x128xf32>
    %25 = arith.maximumf %18, %24 : vector<8x128xf32>
    %26 = vector.extract_strided_slice %10 {offsets = [16, 0], sizes = [8, 128], strides = [1, 1]} : vector<32x128xbf16> to vector<8x128xbf16>
    %cst_16 = arith.constant dense<0.000000e+00> : vector<8x128xf32>
    %27 = tpu.matmul %26, %11, %cst_16 {dimension_numbers = #tpu.dot_dimension_numbers<[1], [0], [0], [1], [0, 0, 1, 1], [], []>} : vector<8x128xbf16>, vector<128x128xbf16>, vector<8x128xf32> -> vector<8x128xf32>
    %28 = vector.broadcast %12 : vector<1x128xf32> to vector<8x128xf32>
    %29 = arith.addf %27, %28 : vector<8x128xf32>
    %cst_17 = arith.constant 0.000000e+00 : f32
    %30 = vector.broadcast %cst_17 : f32 to vector<8x128xf32>
    %31 = arith.maximumf %29, %30 : vector<8x128xf32>
    %32 = arith.maximumf %25, %31 : vector<8x128xf32>
    %33 = vector.extract_strided_slice %10 {offsets = [24, 0], sizes = [8, 128], strides = [1, 1]} : vector<32x128xbf16> to vector<8x128xbf16>
    %cst_18 = arith.constant dense<0.000000e+00> : vector<8x128xf32>
    %34 = tpu.matmul %33, %11, %cst_18 {dimension_numbers = #tpu.dot_dimension_numbers<[1], [0], [0], [1], [0, 0, 1, 1], [], []>} : vector<8x128xbf16>, vector<128x128xbf16>, vector<8x128xf32> -> vector<8x128xf32>
    %35 = vector.broadcast %12 : vector<1x128xf32> to vector<8x128xf32>
    %36 = arith.addf %34, %35 : vector<8x128xf32>
    %cst_19 = arith.constant 0.000000e+00 : f32
    %37 = vector.broadcast %cst_19 : f32 to vector<8x128xf32>
    %38 = arith.maximumf %36, %37 : vector<8x128xf32>
    %39 = arith.maximumf %32, %38 : vector<8x128xf32>
    %c0_20 = arith.constant 0 : index
    %c0_21 = arith.constant 0 : index
    %c0_22 = arith.constant 0 : index
    %40 = vector.load %arg7[%c0_20, %c0_21, %c0_22] : memref<1x8x128xf32, #tpu.memory_space<vmem>>, vector<1x8x128xf32>
    %41 = vector.shape_cast %40 : vector<1x8x128xf32> to vector<8x128xf32>
    %42 = vector.shape_cast %39 : vector<8x128xf32> to vector<1x8x128xf32>
    tpu.vector_store %arg7[%c0_20, %c0_21, %c0_22], %42 {strides = array<i32>} : memref<1x8x128xf32, #tpu.memory_space<vmem>>, vector<1x8x128xf32>,
    return
  }
  func.func @transform_0(%arg0: i32, %arg1: i32) -> (i32, i32, i32, i32) {
    %c0_i32 = arith.constant 0 : i32
    %c0_i32_0 = arith.constant 0 : i32
    %c0_i32_1 = arith.constant 0 : i32
    return %arg0, %c0_i32, %arg1, %c0_i32_0 : i32, i32, i32, i32
  }
  func.func @transform_1(%arg0: i32, %arg1: i32) -> (i32, i32) {
    %c0_i32 = arith.constant 0 : i32
    %c0_i32_0 = arith.constant 0 : i32
    %c0_i32_1 = arith.constant 0 : i32
    return %c0_i32, %c0_i32_0 : i32, i32
  }
  func.func @transform_2(%arg0: i32, %arg1: i32) -> (i32, i32) {
    %c0_i32 = arith.constant 0 : i32
    %c0_i32_0 = arith.constant 0 : i32
    %c0_i32_1 = arith.constant 0 : i32
    return %c0_i32, %c0_i32_0 : i32, i32
  }
  func.func @transform_3(%arg0: i32, %arg1: i32) -> (i32, i32) {
    %c0_i32 = arith.constant 0 : i32
    %c0_i32_0 = arith.constant 0 : i32
    %c0_i32_1 = arith.constant 0 : i32
    return %c0_i32, %c0_i32_0 : i32, i32
  }
  func.func @transform_4(%arg0: i32, %arg1: i32) -> (i32, i32) {
    %c0_i32 = arith.constant 0 : i32
    %c0_i32_0 = arith.constant 0 : i32
    %c0_i32_1 = arith.constant 0 : i32
    return %c0_i32, %c0_i32_0 : i32, i32
  }
  func.func @transform_5(%arg0: i32, %arg1: i32) -> (i32, i32, i32) {
    %c0_i32 = arith.constant 0 : i32
    %c0_i32_0 = arith.constant 0 : i32
    return %arg0, %arg1, %c0_i32 : i32, i32, i32
  }
}

</mosaic_0001>

<llo_original>
// kernel: custom-call.10
$region0: #{custom-call.10}
  %s0 = inlined_call_operand.vmem [shape: f32[2,16], index: 0, kind: output, shape index: {}]

// kernel: neg.1
$region0: #{neg.1}
  #allocation0 [shape = 's32[1]{0}', space=sflag, size = 0x4, scoped, tag = 'scoped memory for neg.1']
  %s0 = inlined_call_operand.vmem [shape: f32[2,8,16], index: 0, kind: input, shape index: {}]
  %s1 = inlined_call_operand.vmem [shape: f32[2,8,16], index: 1, kind: output, shape index: {}]
  %v2 = vld [vmem:[%s0] sm:$0xff]
  %3 = xla_tuple %v2
  %4 = xla_tuple %3
  %v5 = vxor.u32 %v2, 2147483648
  %6 = xla_tuple %v5
  %7 = vst [vmem:[%s1] sm:$0xff] %v5
  %s8 = scalar_lea.vmem %s0, 8
  %v9 = vld [vmem:[%s8] sm:$0xff]
  %10 = xla_tuple %v9
  %11 = xla_tuple %10
  %v12 = vxor.u32 %v9, 2147483648
  %13 = xla_tuple %v12
  %s14 = scalar_lea.vmem %s1, 8
  %15 = vst [vmem:[%s14] sm:$0xff] %v12

// kernel: transition_down_forward.1
$region0: #{transition_down_forward.1}
  #allocation0 [shape = 'u32[]', space=smem, size = 0x4, offset = 0x4, fixed_abs, tag = 'smem constant byte address 0x4 - core index']
  #allocation1 [shape = 'u32[144,128]{1,0:T(1,128)}', space=vmem, size = 0x12000, scoped, tag = 'internal scratch']
  %s0 = inlined_call_operand.vmem [shape: bf16[2,4,8,128], index: 0, kind: input, shape index: {}]
  %s1 = inlined_call_operand.vmem [shape: bf16[128,128], index: 1, kind: input, shape index: {}]
  %s2 = inlined_call_operand.vmem [shape: f32[1,128], index: 2, kind: input, shape index: {}]
  %s3 = inlined_call_operand.vmem [shape: bf16[128,128], index: 3, kind: input, shape index: {}]
  %s4 = inlined_call_operand.vmem [shape: f32[1,128], index: 4, kind: input, shape index: {}]
  %s5 = inlined_call_operand.hbm [shape: f32[2,8,128], index: 5, kind: output, shape index: {}]
  %s6 = sld [smem:[#allocation0]]
  $region53: #{transition_down_forward.1} parent=0
    _
  %s8 = ssub.s32 1, %s6
  %s9 = scalar_select 0, %s8, %s6
  $region1: #{transition_down_forward.1} parent=0
    #allocation2 [shape = 'u8[8192]{0}', space=vmem, size = 0x2000, scoped, tag = 'output window, operand 0']
    #allocation3 [shape = 's32[2]{0}', space=sflag, size = 0x8, scoped, tag = 'scoped memory for transition_down_forward.1']
    %10 = vsyncpa [#allocation3], 0
    %s11 = scalar_lea.sflag [#allocation3], 1
    %12 = vsyncpa %s11, 0
    loop: start=0, step=1, limit=4
    $region2: #{transition_down_forward.1} parent=1 // loop_pre_header
      _
    $region3: #{transition_down_forward.1} parent=1 // loop_header
      %s14 = sphi 0, %s18
      %p15 = scmp.ge.s32.totalorder %s14, 4
      %s21 = sphi 0, %s33
      %s22 = sphi 0, %s29
      %s23 = sphi 0, %s21
      %s24 = sphi 0, %s22
      %s25 = sphi 0, %s23
      %s26 = sphi 0, %s24
      %s38 = sphi 0, %s40
      %s41 = sphi 0, %s38
      %s42 = sphi 0, %s41
      %s58 = sphi 0, %s42
      %s62 = sphi 0, %s62
      %s64 = sphi 0, %s62
      %s65 = sphi 0, %s64
      %s79 = sphi 0, %s65
      %s83 = sphi 0, %s83
      %s85 = sphi 0, %s83
      %s86 = sphi 0, %s85
      %s100 = sphi 0, %s86
      %s104 = sphi 0, %s104
      %s106 = sphi 0, %s104
      %s107 = sphi 0, %s106
      %s121 = sphi 0, %s107
      %s125 = sphi 0, %s125
      %s127 = sphi 0, %s125
      %s128 = sphi 0, %s127
      %s142 = sphi 0, %s128
      %s150 = sphi 0, %s152
      %s153 = sphi 0, %s150
      %s154 = sphi 0, %s153
      %s170 = sphi 0, %s154
    $region4: #{transition_down_forward.1} parent=1 // loop_header_branch
      %17 = sbr.rel (%p15) target = $region8
    $region5: #{transition_down_forward.1} parent=1 // loop_body
      %s19 = ssub.s32 %s14, 1
      %s20 = ssub.s32 %s14, 2
      %s27 = sadd.s32 1, %s22
      %p28 = scmp.ge.s32.totalorder %s27, 1
      %s29 = scalar_select %p28, 0, %s27
      %s30 = sadd.s32 1, %s21
      %s31 = scalar_select %p28, %s30, %s21
      %p32 = scmp.ge.s32.totalorder %s31, 2
      %s33 = scalar_select %p32, 0, %s31
      %s34 = ssub.s32 %s21, %s33
      %s35 = ssub.s32 %s22, %s29
      %s36 = sor.u32 %s34, %s35
      %p37 = scmp.eq.s32.totalorder %s36, 0
      %s39 = sadd.s32 %s38, 1
      %s40 = scalar_select %p37, %s38, %s39
      %p43 = pneg %p37
      %p44 = scmp.eq.s32.totalorder %s14, 1
      %p45 = por %p43, %p44
      %p46 = scmp.ne.s32.totalorder %s38, %s41
      %p47 = scmp.eq.s32.totalorder %s14, 0
      %p48 = por %p46, %p47
      %p49 = scmp.ne.s32.totalorder %s38, %s41
      %p50 = scmp.eq.s32.totalorder %s19, 1
      %p51 = por %p49, %p50
      %p52 = scmp.ne.s32.totalorder %s41, %s42
      %p53 = scmp.eq.s32.totalorder %s19, 0
      %p54 = por %p52, %p53
      %p55 = scmp.ne.s32.totalorder %s41, %s42
      %p56 = scmp.eq.s32.totalorder %s20, 1
      %p57 = por %p55, %p56
      %p59 = scmp.ne.s32.totalorder %s42, %s58
      %p60 = scmp.eq.s32.totalorder %s20, 0
      %p61 = por %p59, %p60
      %s63 = sadd.s32 %s62, 1
      %p66 = scmp.eq.s32.totalorder %s14, 1
      %p67 = scmp.ne.s32.totalorder %s62, %s64
      %p68 = scmp.eq.s32.totalorder %s14, 0
      %p69 = por %p67, %p68
      %p70 = scmp.ne.s32.totalorder %s62, %s64
      %p71 = scmp.eq.s32.totalorder %s19, 1
      %p72 = por %p70, %p71
      %p73 = scmp.ne.s32.totalorder %s64, %s65
      %p74 = scmp.eq.s32.totalorder %s19, 0
      %p75 = por %p73, %p74
      %p76 = scmp.ne.s32.totalorder %s64, %s65
      %p77 = scmp.eq.s32.totalorder %s20, 1
      %p78 = por %p76, %p77
      %p80 = scmp.ne.s32.totalorder %s65, %s79
      %p81 = scmp.eq.s32.totalorder %s20, 0
      %p82 = por %p80, %p81
      %s84 = sadd.s32 %s83, 1
      %p87 = scmp.eq.s32.totalorder %s14, 1
      %p88 = scmp.ne.s32.totalorder %s83, %s85
      %p89 = scmp.eq.s32.totalorder %s14, 0
      %p90 = por %p88, %p89
      %p91 = scmp.ne.s32.totalorder %s83, %s85
      %p92 = scmp.eq.s32.totalorder %s19, 1
      %p93 = por %p91, %p92
      %p94 = scmp.ne.s32.totalorder %s85, %s86
      %p95 = scmp.eq.s32.totalorder %s19, 0
      %p96 = por %p94, %p95
      %p97 = scmp.ne.s32.totalorder %s85, %s86
      %p98 = scmp.eq.s32.totalorder %s20, 1
      %p99 = por %p97, %p98
      %p101 = scmp.ne.s32.totalorder %s86, %s100
      %p102 = scmp.eq.s32.totalorder %s20, 0
      %p103 = por %p101, %p102
      %s105 = sadd.s32 %s104, 1
      %p108 = scmp.eq.s32.totalorder %s14, 1
      %p109 = scmp.ne.s32.totalorder %s104, %s106
      %p110 = scmp.eq.s32.totalorder %s14, 0
      %p111 = por %p109, %p110
      %p112 = scmp.ne.s32.totalorder %s104, %s106
      %p113 = scmp.eq.s32.totalorder %s19, 1
      %p114 = por %p112, %p113
      %p115 = scmp.ne.s32.totalorder %s106, %s107
      %p116 = scmp.eq.s32.totalorder %s19, 0
      %p117 = por %p115, %p116
      %p118 = scmp.ne.s32.totalorder %s106, %s107
      %p119 = scmp.eq.s32.totalorder %s20, 1
      %p120 = por %p118, %p119
      %p122 = scmp.ne.s32.totalorder %s107, %s121
      %p123 = scmp.eq.s32.totalorder %s20, 0
      %p124 = por %p122, %p123
      %s126 = sadd.s32 %s125, 1
      %p129 = scmp.eq.s32.totalorder %s14, 1
      %p130 = scmp.ne.s32.totalorder %s125, %s127
      %p131 = scmp.eq.s32.totalorder %s14, 0
      %p132 = por %p130, %p131
      %p133 = scmp.ne.s32.totalorder %s125, %s127
      %p134 = scmp.eq.s32.totalorder %s19, 1
      %p135 = por %p133, %p134
      %p136 = scmp.ne.s32.totalorder %s127, %s128
      %p137 = scmp.eq.s32.totalorder %s19, 0
      %p138 = por %p136, %p137
      %p139 = scmp.ne.s32.totalorder %s127, %s128
      %p140 = scmp.eq.s32.totalorder %s20, 1
      %p141 = por %p139, %p140
      %p143 = scmp.ne.s32.totalorder %s128, %s142
      %p144 = scmp.eq.s32.totalorder %s20, 0
      %p145 = por %p143, %p144
      %s146 = ssub.s32 %s21, %s33
      %s147 = ssub.s32 %s22, %s29
      %s148 = sor.u32 %s146, %s147
      %p149 = scmp.eq.s32.totalorder %s148, 0
      %s151 = sadd.s32 %s150, 1
      %s152 = scalar_select %p149, %s150, %s151
      %p155 = pneg %p149
      %p156 = scmp.eq.s32.totalorder %s14, 1
      %p157 = por %p155, %p156
      %p158 = scmp.ne.s32.totalorder %s150, %s153
      %p159 = scmp.eq.s32.totalorder %s14, 0
      %p160 = por %p158, %p159
      %p161 = scmp.ne.s32.totalorder %s150, %s153
      %p162 = scmp.eq.s32.totalorder %s19, 1
      %p163 = por %p161, %p162
      %p164 = scmp.ne.s32.totalorder %s153, %s154
      %p165 = scmp.eq.s32.totalorder %s19, 0
      %p166 = por %p164, %p165
      %p167 = scmp.ne.s32.totalorder %s153, %s154
      %p168 = scmp.eq.s32.totalorder %s20, 1
      %p169 = por %p167, %p168
      %p171 = scmp.ne.s32.totalorder %s154, %s170
      %p172 = scmp.eq.s32.totalorder %s20, 0
      %p173 = por %p171, %p172
      %p174 = scmp.le.s32.totalorder 1, %s14
      %p175 = scmp.lt.s32.totalorder %s14, 3
      %p176 = pnand %p174, %p175
      %p177 = pneg %p176
      // Predicated region
      $region9: #{transition_down_forward.1} parent=5 // pred_check
        _
      $region10: #{transition_down_forward.1} parent=5 // pred_check_branch
        %179 = sbr.rel (%p176) target = $region12
      $region11: #{transition_down_forward.1} parent=5 // pred_region
        %s180 = ssub.s32 %s14, 1
        // Predicated region
        $region13: #{transition_down_forward.1} parent=11 // pred_check
          %p181 = pneg %p75
        $region14: #{transition_down_forward.1} parent=11 // pred_check_branch
          %183 = sbr.rel (%p181) target = $region16
        $region15: #{transition_down_forward.1} parent=11 // pred_region
          _
        $region16: #{transition_down_forward.1} parent=11 // pred_fallthru
          _
        // Predicated region
        $region17: #{transition_down_forward.1} parent=11 // pred_check
          %p184 = pneg %p96
        $region18: #{transition_down_forward.1} parent=11 // pred_check_branch
          %186 = sbr.rel (%p184) target = $region20
        $region19: #{transition_down_forward.1} parent=11 // pred_region
          _
        $region20: #{transition_down_forward.1} parent=11 // pred_fallthru
          _
        // Predicated region
        $region21: #{transition_down_forward.1} parent=11 // pred_check
          %p187 = pneg %p117
        $region22: #{transition_down_forward.1} parent=11 // pred_check_branch
          %189 = sbr.rel (%p187) target = $region24
        $region23: #{transition_down_forward.1} parent=11 // pred_region
          _
        $region24: #{transition_down_forward.1} parent=11 // pred_fallthru
          _
        // Predicated region
        $region25: #{transition_down_forward.1} parent=11 // pred_check
          %p190 = pneg %p138
        $region26: #{transition_down_forward.1} parent=11 // pred_check_branch
          %192 = sbr.rel (%p190) target = $region28
        $region27: #{transition_down_forward.1} parent=11 // pred_region
          _
        $region28: #{transition_down_forward.1} parent=11 // pred_fallthru
          _
      $region12: #{transition_down_forward.1} parent=5 // pred_fallthru
        _
      %p193 = scmp.lt.s32.totalorder %s14, 2
      // Predicated region
      $region29: #{transition_down_forward.1} parent=5 // pred_check
        %p194 = pneg %p193
      $region30: #{transition_down_forward.1} parent=5 // pred_check_branch
        %196 = sbr.rel (%p194) target = $region32
      $region31: #{transition_down_forward.1} parent=5 // pred_region
        // Predicated region
        $region33: #{transition_down_forward.1} parent=31 // pred_check
          %p197 = pneg %p48
        $region34: #{transition_down_forward.1} parent=31 // pred_check_branch
          %199 = sbr.rel (%p197) target = $region36
        $region35: #{transition_down_forward.1} parent=31 // pred_region
          %p200 = scmp.lt.s32.totalorder %s21, 1
          %s201 = scalar_select %p200, %s21, 1
          %p202 = scmp.lt.s32.totalorder %s22, 0
          %s203 = scalar_select %p202, %s22, 0
          %s204 = smul.addr %s201, 4
          %s205 = sadd.s32 %s203, %s204
          %s206 = smul.addr %s205, 4
          %s207 = scalar_lea.vmem %s0, %s206
        $region36: #{transition_down_forward.1} parent=31 // pred_fallthru
          _
      $region32: #{transition_down_forward.1} parent=5 // pred_fallthru
        _
      %p208 = scmp.le.s32.totalorder 1, %s14
      %p209 = scmp.lt.s32.totalorder %s14, 3
      %p210 = pnand %p208, %p209
      %p211 = pneg %p210
      // Predicated region
      $region37: #{transition_down_forward.1} parent=5 // pred_check
        _
      $region38: #{transition_down_forward.1} parent=5 // pred_check_branch
        %213 = sbr.rel (%p210) target = $region40
      $region39: #{transition_down_forward.1} parent=5 // pred_region
        %s214 = ssub.s32 %s14, 1
        %p215 = scmp.lt.s32.totalorder %s23, 1
        %s216 = scalar_select %p215, %s23, 1
        %p217 = scmp.lt.s32.totalorder %s24, 0
        %s218 = scalar_select %p217, %s24, 0
        %s219 = smul.addr %s216, 4
        %s220 = sadd.s32 %s218, %s219
        %s221 = smul.addr %s220, 4
        %s222 = scalar_lea.vmem %s0, %s221
        %p223 = pneg %p54
        %p224 = pneg %p51
        %p225 = pneg %p75
        %p226 = pneg %p72
        %p227 = pneg %p96
        %p228 = pneg %p93
        %p229 = pneg %p117
        %p230 = pneg %p114
        %p231 = pneg %p138
        %p232 = pneg %p135
        %p233 = pneg %p166
        %p234 = pneg %p163
        %s235 = sand.u32 %s153, 1
        %s236 = scalar_lea.sflag [#allocation3], %s235
        %s237 = sand.u32 %s153, 1
        %s238 = smul.addr %s237, 8
        %s239 = scalar_lea.vmem [#allocation2], %s238
        %p240 = scmp.lt.s32.totalorder %s23, 1
        %s241 = scalar_select %p240, %s23, 1
        %p242 = scmp.lt.s32.totalorder %s24, 0
        %s243 = scalar_select %p242, %s24, 0
        %s244 = smul.addr %s241, 4
        %s245 = sadd.s32 %s243, %s244
        %s246 = smul.addr %s245, 4
        %s247 = scalar_lea.vmem %s0, %s246
        %v249 = vld [vmem:[%s247] sm:$0xf]
        %v250 = vld [vmem:[%s247 + $0x4] sm:$0xf]
        %v251 = vld [vmem:[%s247 + $0x8] sm:$0xf]
        %v252 = vld [vmem:[%s247 + $0xc] sm:$0xf]
        %v253 = vld [vmem:[%s1] sm:$0xf]
        %v254 = vld [vmem:[%s1 + $0x4] sm:$0xf]
        %v255 = vld [vmem:[%s1 + $0x8] sm:$0xf]
        %v256 = vld [vmem:[%s1 + $0xc] sm:$0xf]
        %v257 = vld [vmem:[%s1 + $0x10] sm:$0xf]
        %v258 = vld [vmem:[%s1 + $0x14] sm:$0xf]
        %v259 = vld [vmem:[%s1 + $0x18] sm:$0xf]
        %v260 = vld [vmem:[%s1 + $0x1c] sm:$0xf]
        %v261 = vld [vmem:[%s1 + $0x20] sm:$0xf]
        %v262 = vld [vmem:[%s1 + $0x24] sm:$0xf]
        %v263 = vld [vmem:[%s1 + $0x28] sm:$0xf]
        %v264 = vld [vmem:[%s1 + $0x2c] sm:$0xf]
        %v265 = vld [vmem:[%s1 + $0x30] sm:$0xf]
        %v266 = vld [vmem:[%s1 + $0x34] sm:$0xf]
        %v267 = vld [vmem:[%s1 + $0x38] sm:$0xf]
        %v268 = vld [vmem:[%s1 + $0x3c] sm:$0xf]
        %v269 = vld [vmem:[%s2] sm:$0x1]
        %v271 = vlaneseq
        %v272 = vshrl.u32 %v271, 7
        %v273 = vsub.s32 0, %v272
        %v274 = vrot.slane %v269, %v273
        %v280 = vunpack.c.l.b16 %v249
        %v281 = vunpack.c.l.b16 %v250
        %v282 = vunpack.c.l.b16 %v251
        %v283 = vunpack.c.l.b16 %v252
        %v284 = vpack.c.b16 %v281, %v280
        %v285 = vpack.c.b16 %v283, %v282
        %v304 = vunpack.c.l.b16 %v253
        %v305 = vunpack.c.l.b16 %v254
        %v306 = vunpack.c.l.b16 %v255
        %v307 = vunpack.c.l.b16 %v256
        %v308 = vunpack.c.l.b16 %v257
        %v309 = vunpack.c.l.b16 %v258
        %v310 = vunpack.c.l.b16 %v259
        %v311 = vunpack.c.l.b16 %v260
        %v312 = vunpack.c.l.b16 %v261
        %v313 = vunpack.c.l.b16 %v262
        %v314 = vunpack.c.l.b16 %v263
        %v315 = vunpack.c.l.b16 %v264
        %v316 = vunpack.c.l.b16 %v265
        %v317 = vunpack.c.l.b16 %v266
        %v318 = vunpack.c.l.b16 %v267
        %v319 = vunpack.c.l.b16 %v268
        %v320 = vpack.c.b16 %v305, %v304
        %v321 = vpack.c.b16 %v307, %v306
        %v322 = vpack.c.b16 %v309, %v308
        %v323 = vpack.c.b16 %v311, %v310
        %v324 = vpack.c.b16 %v313, %v312
        %v325 = vpack.c.b16 %v315, %v314
        %v326 = vpack.c.b16 %v317, %v316
        %v327 = vpack.c.b16 %v319, %v318
        %336 = vmatprep.subr.bf16.mxu0 0
        %337 = vmatpush1.bf16.msra.mxu0 %v327
        %338 = vmatprep.subr.bf16.mxu0 0
        %339 = vmatpush1.bf16.msra.mxu0 %v326
        %340 = vmatprep.subr.bf16.mxu0 0
        %341 = vmatpush1.bf16.msra.mxu0 %v325
        %342 = vmatprep.subr.bf16.mxu0 0
        %343 = vmatpush1.bf16.msra.mxu0 %v324
        %344 = vmatprep.subr.bf16.mxu0 0
        %345 = vmatpush1.bf16.msra.mxu0 %v323
        %346 = vmatprep.subr.bf16.mxu0 0
        %347 = vmatpush1.bf16.msra.mxu0 %v322
        %348 = vmatprep.subr.bf16.mxu0 0
        %349 = vmatpush1.bf16.msra.mxu0 %v321
        %350 = vmatprep.subr.bf16.mxu0 0
        %351 = vmatpush1.bf16.msra.mxu0 %v320
        %352 = vmatprep.subr.bf16.mxu0 0
        %353 = vmatpush2.bf16.msra.mxu0 0
        %354 = vmatprep.subr.bf16.mxu0 0
        %355 = vmatpush2.bf16.msra.mxu0 0
        %356 = vmatprep.subr.bf16.mxu0 0
        %357 = vmatpush2.bf16.msra.mxu0 0
        %358 = vmatprep.subr.bf16.mxu0 0
        %359 = vmatpush2.bf16.msra.mxu0 0
        %360 = vmatprep.subr.bf16.mxu0 0
        %361 = vmatpush2.bf16.msra.mxu0 0
        %362 = vmatprep.subr.bf16.mxu0 0
        %363 = vmatpush2.bf16.msra.mxu0 0
        %364 = vmatprep.subr.bf16.mxu0 0
        %365 = vmatpush2.bf16.msra.mxu0 0
        %366 = vmatprep.subr.bf16.mxu0 0
        %367 = vmatpush2.bf16.msra.mxu0 0
        %368 = vmatprep.mubr.bf16.mxu0 0
        %369 = vmatmul.mubr.bf16.gmra.mxu0 %v284
        %v370 = vpop.f32.mrf.mxu0
        %v371 = vadd.f32 %v274, %v370
        %v372 = vpop.f32.mrf.mxu0
        %v373 = vpop.f32.mrf.mxu0
        %v374 = vadd.f32 %v274, %v373
        %v375 = vpop.f32.mrf.mxu0
        %376 = vmatprep.mubr.bf16.mxu0 0
        %377 = vmatmul.mubr.bf16.gmra.mxu0 %v285
        %v378 = vpop.f32.mrf.mxu0
        %v379 = vadd.f32 %v274, %v378
        %v380 = vpop.f32.mrf.mxu0
        %v381 = vpop.f32.mrf.mxu0
        %v382 = vadd.f32 %v274, %v381
        %v383 = vpop.f32.mrf.mxu0
        %384 = vdwg.mxu0
        %v385 = vmax.f32 %v371, 0.0
        %v386 = vmax.f32 %v374, 0.0
        %v387 = vmax.f32 %v379, 0.0
        %v388 = vmax.f32 %v382, 0.0
        %v389 = vpack.c.bf16 %v386, %v385
        %v390 = vpack.c.bf16 %v388, %v387
        %v391 = vld [vmem:[%s3] sm:$0xf]
        %v392 = vld [vmem:[%s3 + $0x4] sm:$0xf]
        %v393 = vld [vmem:[%s3 + $0x8] sm:$0xf]
        %v394 = vld [vmem:[%s3 + $0xc] sm:$0xf]
        %v395 = vld [vmem:[%s3 + $0x10] sm:$0xf]
        %v396 = vld [vmem:[%s3 + $0x14] sm:$0xf]
        %v397 = vld [vmem:[%s3 + $0x18] sm:$0xf]
        %v398 = vld [vmem:[%s3 + $0x1c] sm:$0xf]
        %v399 = vld [vmem:[%s3 + $0x20] sm:$0xf]
        %v400 = vld [vmem:[%s3 + $0x24] sm:$0xf]
        %v401 = vld [vmem:[%s3 + $0x28] sm:$0xf]
        %v402 = vld [vmem:[%s3 + $0x2c] sm:$0xf]
        %v403 = vld [vmem:[%s3 + $0x30] sm:$0xf]
        %v404 = vld [vmem:[%s3 + $0x34] sm:$0xf]
        %v405 = vld [vmem:[%s3 + $0x38] sm:$0xf]
        %v406 = vld [vmem:[%s3 + $0x3c] sm:$0xf]
        %v407 = vld [vmem:[%s4] sm:$0x1]
        %v409 = vlaneseq
        %v410 = vshrl.u32 %v409, 7
        %v411 = vsub.s32 0, %v410
        %v412 = vrot.slane %v407, %v411
        %v430 = vunpack.c.l.b16 %v391
        %v431 = vunpack.c.l.b16 %v392
        %v432 = vunpack.c.l.b16 %v393
        %v433 = vunpack.c.l.b16 %v394
        %v434 = vunpack.c.l.b16 %v395
        %v435 = vunpack.c.l.b16 %v396
        %v436 = vunpack.c.l.b16 %v397
        %v437 = vunpack.c.l.b16 %v398
        %v438 = vunpack.c.l.b16 %v399
        %v439 = vunpack.c.l.b16 %v400
        %v440 = vunpack.c.l.b16 %v401
        %v441 = vunpack.c.l.b16 %v402
        %v442 = vunpack.c.l.b16 %v403
        %v443 = vunpack.c.l.b16 %v404
        %v444 = vunpack.c.l.b16 %v405
        %v445 = vunpack.c.l.b16 %v406
        %v446 = vpack.c.b16 %v431, %v430
        %v447 = vpack.c.b16 %v433, %v432
        %v448 = vpack.c.b16 %v435, %v434
        %v449 = vpack.c.b16 %v437, %v436
        %v450 = vpack.c.b16 %v439, %v438
        %v451 = vpack.c.b16 %v441, %v440
        %v452 = vpack.c.b16 %v443, %v442
        %v453 = vpack.c.b16 %v445, %v444
        %462 = vmatprep.subr.bf16.mxu0 0
        %463 = vmatpush1.bf16.msra.mxu0 %v453
        %464 = vmatprep.subr.bf16.mxu0 0
        %465 = vmatpush1.bf16.msra.mxu0 %v452
        %466 = vmatprep.subr.bf16.mxu0 0
        %467 = vmatpush1.bf16.msra.mxu0 %v451
        %468 = vmatprep.subr.bf16.mxu0 0
        %469 = vmatpush1.bf16.msra.mxu0 %v450
        %470 = vmatprep.subr.bf16.mxu0 0
        %471 = vmatpush1.bf16.msra.mxu0 %v449
        %472 = vmatprep.subr.bf16.mxu0 0
        %473 = vmatpush1.bf16.msra.mxu0 %v448
        %474 = vmatprep.subr.bf16.mxu0 0
        %475 = vmatpush1.bf16.msra.mxu0 %v447
        %476 = vmatprep.subr.bf16.mxu0 0
        %477 = vmatpush1.bf16.msra.mxu0 %v446
        %478 = vmatprep.subr.bf16.mxu0 0
        %479 = vmatpush2.bf16.msra.mxu0 0
        %480 = vmatprep.subr.bf16.mxu0 0
        %481 = vmatpush2.bf16.msra.mxu0 0
        %482 = vmatprep.subr.bf16.mxu0 0
        %483 = vmatpush2.bf16.msra.mxu0 0
        %484 = vmatprep.subr.bf16.mxu0 0
        %485 = vmatpush2.bf16.msra.mxu0 0
        %486 = vmatprep.subr.bf16.mxu0 0
        %487 = vmatpush2.bf16.msra.mxu0 0
        %488 = vmatprep.subr.bf16.mxu0 0
        %489 = vmatpush2.bf16.msra.mxu0 0
        %490 = vmatprep.subr.bf16.mxu0 0
        %491 = vmatpush2.bf16.msra.mxu0 0
        %492 = vmatprep.subr.bf16.mxu0 0
        %493 = vmatpush2.bf16.msra.mxu0 0
        %494 = vmatprep.mubr.bf16.mxu0 0
        %495 = vmatmul.mubr.bf16.gmra.mxu0 %v389
        %v496 = vpop.f32.mrf.mxu0
        %v497 = vadd.f32 %v412, %v496
        %v498 = vpop.f32.mrf.mxu0
        %v499 = vpop.f32.mrf.mxu0
        %v500 = vpop.f32.mrf.mxu0
        %501 = vdwg.mxu0
        %v502 = vmax.f32 %v497, 0.0
        %v504 = vrot.slane %v389, 4
        %506 = vmatprep.subr.bf16.mxu0 0
        %507 = vmatpush1.bf16.msra.mxu0 %v453
        %508 = vmatprep.subr.bf16.mxu0 0
        %509 = vmatpush1.bf16.msra.mxu0 %v452
        %510 = vmatprep.subr.bf16.mxu0 0
        %511 = vmatpush1.bf16.msra.mxu0 %v451
        %512 = vmatprep.subr.bf16.mxu0 0
        %513 = vmatpush1.bf16.msra.mxu0 %v450
        %514 = vmatprep.subr.bf16.mxu0 0
        %515 = vmatpush1.bf16.msra.mxu0 %v449
        %516 = vmatprep.subr.bf16.mxu0 0
        %517 = vmatpush1.bf16.msra.mxu0 %v448
        %518 = vmatprep.subr.bf16.mxu0 0
        %519 = vmatpush1.bf16.msra.mxu0 %v447
        %520 = vmatprep.subr.bf16.mxu0 0
        %521 = vmatpush1.bf16.msra.mxu0 %v446
        %522 = vmatprep.subr.bf16.mxu0 0
        %523 = vmatpush2.bf16.msra.mxu0 0
        %524 = vmatprep.subr.bf16.mxu0 0
        %525 = vmatpush2.bf16.msra.mxu0 0
        %526 = vmatprep.subr.bf16.mxu0 0
        %527 = vmatpush2.bf16.msra.mxu0 0
        %528 = vmatprep.subr.bf16.mxu0 0
        %529 = vmatpush2.bf16.msra.mxu0 0
        %530 = vmatprep.subr.bf16.mxu0 0
        %531 = vmatpush2.bf16.msra.mxu0 0
        %532 = vmatprep.subr.bf16.mxu0 0
        %533 = vmatpush2.bf16.msra.mxu0 0
        %534 = vmatprep.subr.bf16.mxu0 0
        %535 = vmatpush2.bf16.msra.mxu0 0
        %536 = vmatprep.subr.bf16.mxu0 0
        %537 = vmatpush2.bf16.msra.mxu0 0
        %538 = vmatprep.mubr.bf16.mxu0 0
        %539 = vmatmul.mubr.bf16.gmra.mxu0 %v504
        %v540 = vpop.f32.mrf.mxu0
        %v541 = vadd.f32 %v412, %v540
        %v542 = vpop.f32.mrf.mxu0
        %v543 = vpop.f32.mrf.mxu0
        %v544 = vpop.f32.mrf.mxu0
        %545 = vdwg.mxu0
        %v546 = vmax.f32 %v541, 0.0
        %v547 = vmax.f32 %v502, %v546
        %548 = vmatprep.subr.bf16.mxu0 0
        %549 = vmatpush1.bf16.msra.mxu0 %v453
        %550 = vmatprep.subr.bf16.mxu0 0
        %551 = vmatpush1.bf16.msra.mxu0 %v452
        %552 = vmatprep.subr.bf16.mxu0 0
        %553 = vmatpush1.bf16.msra.mxu0 %v451
        %554 = vmatprep.subr.bf16.mxu0 0
        %555 = vmatpush1.bf16.msra.mxu0 %v450
        %556 = vmatprep.subr.bf16.mxu0 0
        %557 = vmatpush1.bf16.msra.mxu0 %v449
        %558 = vmatprep.subr.bf16.mxu0 0
        %559 = vmatpush1.bf16.msra.mxu0 %v448
        %560 = vmatprep.subr.bf16.mxu0 0
        %561 = vmatpush1.bf16.msra.mxu0 %v447
        %562 = vmatprep.subr.bf16.mxu0 0
        %563 = vmatpush1.bf16.msra.mxu0 %v446
        %564 = vmatprep.subr.bf16.mxu0 0
        %565 = vmatpush2.bf16.msra.mxu0 0
        %566 = vmatprep.subr.bf16.mxu0 0
        %567 = vmatpush2.bf16.msra.mxu0 0
        %568 = vmatprep.subr.bf16.mxu0 0
        %569 = vmatpush2.bf16.msra.mxu0 0
        %570 = vmatprep.subr.bf16.mxu0 0
        %571 = vmatpush2.bf16.msra.mxu0 0
        %572 = vmatprep.subr.bf16.mxu0 0
        %573 = vmatpush2.bf16.msra.mxu0 0
        %574 = vmatprep.subr.bf16.mxu0 0
        %575 = vmatpush2.bf16.msra.mxu0 0
        %576 = vmatprep.subr.bf16.mxu0 0
        %577 = vmatpush2.bf16.msra.mxu0 0
        %578 = vmatprep.subr.bf16.mxu0 0
        %579 = vmatpush2.bf16.msra.mxu0 0
        %580 = vmatprep.mubr.bf16.mxu0 0
        %581 = vmatmul.mubr.bf16.gmra.mxu0 %v390
        %v582 = vpop.f32.mrf.mxu0
        %v583 = vadd.f32 %v412, %v582
        %v584 = vpop.f32.mrf.mxu0
        %v585 = vpop.f32.mrf.mxu0
        %v586 = vpop.f32.mrf.mxu0
        %587 = vdwg.mxu0
        %v588 = vmax.f32 %v583, 0.0
        %v589 = vmax.f32 %v547, %v588
        %v591 = vrot.slane %v390, 4
        %593 = vmatprep.subr.bf16.mxu0 0
        %594 = vmatpush1.bf16.msra.mxu0 %v453
        %595 = vmatprep.subr.bf16.mxu0 0
        %596 = vmatpush1.bf16.msra.mxu0 %v452
        %597 = vmatprep.subr.bf16.mxu0 0
        %598 = vmatpush1.bf16.msra.mxu0 %v451
        %599 = vmatprep.subr.bf16.mxu0 0
        %600 = vmatpush1.bf16.msra.mxu0 %v450
        %601 = vmatprep.subr.bf16.mxu0 0
        %602 = vmatpush1.bf16.msra.mxu0 %v449
        %603 = vmatprep.subr.bf16.mxu0 0
        %604 = vmatpush1.bf16.msra.mxu0 %v448
        %605 = vmatprep.subr.bf16.mxu0 0
        %606 = vmatpush1.bf16.msra.mxu0 %v447
        %607 = vmatprep.subr.bf16.mxu0 0
        %608 = vmatpush1.bf16.msra.mxu0 %v446
        %609 = vmatprep.subr.bf16.mxu0 0
        %610 = vmatpush2.bf16.msra.mxu0 0
        %611 = vmatprep.subr.bf16.mxu0 0
        %612 = vmatpush2.bf16.msra.mxu0 0
        %613 = vmatprep.subr.bf16.mxu0 0
        %614 = vmatpush2.bf16.msra.mxu0 0
        %615 = vmatprep.subr.bf16.mxu0 0
        %616 = vmatpush2.bf16.msra.mxu0 0
        %617 = vmatprep.subr.bf16.mxu0 0
        %618 = vmatpush2.bf16.msra.mxu0 0
        %619 = vmatprep.subr.bf16.mxu0 0
        %620 = vmatpush2.bf16.msra.mxu0 0
        %621 = vmatprep.subr.bf16.mxu0 0
        %622 = vmatpush2.bf16.msra.mxu0 0
        %623 = vmatprep.subr.bf16.mxu0 0
        %624 = vmatpush2.bf16.msra.mxu0 0
        %625 = vmatprep.mubr.bf16.mxu0 0
        %626 = vmatmul.mubr.bf16.gmra.mxu0 %v591
        %v627 = vpop.f32.mrf.mxu0
        %v628 = vadd.f32 %v412, %v627
        %v629 = vpop.f32.mrf.mxu0
        %v630 = vpop.f32.mrf.mxu0
        %v631 = vpop.f32.mrf.mxu0
        %632 = vdwg.mxu0
        %v633 = vmax.f32 %v628, 0.0
        %v634 = vmax.f32 %v589, %v633
        %635 = vst [vmem:[%s239] sm:$0xff] %v634
        %s636 = sand.u32 %s153, 1
        %s637 = scalar_lea.sflag [#allocation3], %s636
        %s638 = sand.u32 %s153, 1
        %s639 = smul.addr %s638, 8
        %s640 = scalar_lea.vmem [#allocation2], %s639
        // Predicated region
        $region41: #{transition_down_forward.1} parent=39 // pred_check
          %p641 = pneg %p163
        $region42: #{transition_down_forward.1} parent=39 // pred_check_branch
          %643 = sbr.rel (%p641) target = $region44
        $region43: #{transition_down_forward.1} parent=39 // pred_region
          %s645 = ssub.s32 128, 128
          %646 = vsyncadd %s637, %s645
          %s647 = sadd.s32 %s24, %s23
          %s648 = smul.addr %s647, 128
          %s649 = scalar_lea.hbm %s5, %s648
          %s651 = sshll.u32 %s640, 4
          %s652 = int_to_ptr.vmem [resolvable:$true] %s651
          %654 = dma.vmem_to_hbm [thread:$0]  %s652, 128, %s649, %s637
        $region44: #{transition_down_forward.1} parent=39 // pred_fallthru
          _
      $region40: #{transition_down_forward.1} parent=5 // pred_fallthru
        _
      %p655 = scmp.le.s32.totalorder 2, %s14
      // Predicated region
      $region45: #{transition_down_forward.1} parent=5 // pred_check
        %p656 = pneg %p655
      $region46: #{transition_down_forward.1} parent=5 // pred_check_branch
        %658 = sbr.rel (%p656) target = $region48
      $region47: #{transition_down_forward.1} parent=5 // pred_region
        %s659 = ssub.s32 %s14, 2
        // Predicated region
        $region49: #{transition_down_forward.1} parent=47 // pred_check
          %p660 = pneg %p169
        $region50: #{transition_down_forward.1} parent=47 // pred_check_branch
          %662 = sbr.rel (%p660) target = $region52
        $region51: #{transition_down_forward.1} parent=47 // pred_region
          %s663 = sand.u32 %s154, 1
          %s664 = scalar_lea.sflag [#allocation3], %s663
          %s665 = sand.u32 %s154, 1
          %s666 = smul.addr %s665, 8
          %s667 = scalar_lea.vmem [#allocation2], %s666
          %668 = dma.done %s664, 128
        $region52: #{transition_down_forward.1} parent=47 // pred_fallthru
          _
      $region48: #{transition_down_forward.1} parent=5 // pred_fallthru
        _
    $region6: #{transition_down_forward.1} parent=1 // loop_footer
      %s18 = sadd.s32 1, %s14
    $region7: #{transition_down_forward.1} parent=1 // loop_footer_branch
      %13 = sbr.rel target = $region3
    $region8: #{transition_down_forward.1} parent=1 // loop_exit
      _
    %669 = vsyncpa [#allocation3], 1
    %s670 = scalar_lea.sflag [#allocation3], 1
    %671 = vsyncpa %s670, 1

</llo_original>
